<compile_context>
chip_gen: v6e
topology: v6e:2x2x1
jax: 0.10.0
libtpu: 0.0.40
codegen_flags: <defaults>
</compile_context>

<pallas_src>
import jax
import jax.numpy as jnp
from jax.experimental import pallas as pl
from jax.experimental.pallas import tpu as pltpu


def _make_head_kernel(apply_softmax: bool):
    """Kernel computing the retrieval head for one batch tile.

    apply_softmax=True : w/b hold the ±(class1-class0) difference form, so the
                         2-class softmax reduces to an elementwise sigmoid.
    apply_softmax=False: w/b are the raw Linear(H, 2) parameters; emit logits.
    """

    def kernel(x_ref, w_ref, b_ref, o_ref):
        x = x_ref[...]                      # (TB, H)  bf16/f32 pooled-feature tile
        w = w_ref[...]                      # (H, 2)   pre-transposed weight (x's dtype)

        # MXU matmul with f32 accumulation; contraction on the shared H axis,
        # so no in-kernel transpose/relayout is emitted.
        z = jnp.dot(x, w, preferred_element_type=jnp.float32)   # (TB, 2) f32
        z = z + b_ref[...]                                       # (1, 2) f32 bias

        if apply_softmax:
            # softmax over 2 classes == sigmoid of the signed logit difference.
            # z[:, 0] = -(l1 - l0), z[:, 1] = +(l1 - l0)  ->  elementwise sigmoid
            # gives [p0, p1] directly: no XLU max/sum, exp on EUP, approx vrcp.
            o_ref[...] = pl.reciprocal(1.0 + jnp.exp(-z), approx=True).astype(o_ref.dtype)
        else:
            o_ref[...] = z.astype(o_ref.dtype)

    return kernel


def retrieval_head(x, weight, bias, *, zero_shot: bool = False, block_b: int = 2048):
    """Pallas implementation of RetrievalModel.forward given pooled features x.

    x      : [B, H]  bf16 or f32  (pooled output of lxrt_encoder)
    weight : [2, H]  (seq_relationship_new.weight, PyTorch nn.Linear layout)
    bias   : [2]     (seq_relationship_new.bias)
    returns: [B, 2]  f32 softmax probabilities (raw logits if zero_shot)
    """
    B, H = x.shape
    assert weight.shape == (2, H)
    assert bias.shape == (2,)

    weight = weight.astype(jnp.float32)
    bias = bias.astype(jnp.float32)

    if zero_shot:
        # Raw logits: need both class columns.
        w_blk = weight.T.astype(x.dtype)                   # (H, 2)
        b_blk = bias.reshape(1, 2)                         # (1, 2) f32
    else:
        # Difference form: softmax([l0, l1]) == sigmoid([-(l1-l0), +(l1-l0)]).
        w_diff = weight[1] - weight[0]                     # (H,)
        b_diff = bias[1] - bias[0]
        w_blk = jnp.stack([-w_diff, w_diff], axis=1).astype(x.dtype)          # (H, 2)
        b_blk = jnp.stack([-b_diff, b_diff]).reshape(1, 2).astype(jnp.float32)

    # ---- batch tiling ------------------------------------------------------
    # Native sublane pack per dtype: f32 -> 8 rows, bf16 -> 16, int8/fp8 -> 32.
    row_align = max(8, 32 // jnp.dtype(x.dtype).itemsize)
    tb = min(block_b, B)
    if tb >= B:
        if B > 2 * row_align:
            # Whole batch fits in one block but is big enough to split: use two
            # aligned blocks so v7x's second TensorCore gets work.
            half = -(-B // 2)
            tb = -(-half // row_align) * row_align
        else:
            tb = B                         # single block == full array (any size legal)
    else:
        tb = max(row_align, (tb // row_align) * row_align)
    grid = (pl.cdiv(B, tb),)

    kernel = _make_head_kernel(apply_softmax=not zero_shot)

    x_bytes = jnp.dtype(x.dtype).itemsize
    cost = pl.CostEstimate(
        flops=4 * B * H + 8 * B,
        transcendentals=(4 * B) if not zero_shot else 0,
        bytes_accessed=B * H * x_bytes + H * 2 * x_bytes + 2 * 4 + B * 2 * 4,
    )

    out = pl.pallas_call(
        kernel,
        out_shape=jax.ShapeDtypeStruct((B, 2), jnp.float32),
        grid=grid,
        in_specs=[
            pl.BlockSpec((tb, H), lambda i: (i, 0)),   # x: tiled over batch (pipelined)
            pl.BlockSpec((H, 2), lambda i: (0, 0)),    # weight: replicated
            pl.BlockSpec((1, 2), lambda i: (0, 0)),    # bias: replicated (1, 2) block
        ],
        out_specs=pl.BlockSpec((tb, 2), lambda i: (i, 0)),
        compiler_params=pltpu.CompilerParams(
            # Batch tiles are independent -> v7x's two TensorCores split the grid.
            dimension_semantics=("parallel",),
            # No vmem_limit_bytes needed: at block_b=2048, H=768, bf16 the
            # double-buffered x tile is ~6 MiB, far under every generation's
            # scoped-VMEM default (16 MiB v5e / 32 MiB v6e, v7x).
        ),
        cost_estimate=cost,
    )(x, w_blk, b_blk)
    return out


if __name__ == "__main__":
    # Small, deterministic shapes consistent with the module's forward:
    # batch=2, hid_dim=32 (stand-in for LXMERT's 768).
    B = 2
    HID_DIM = 32

    key = jax.random.PRNGKey(0)
    k_x, k_w, k_b = jax.random.split(key, 3)

    # Pooled LXMERT features kept in bf16 (no f32 upcast -> half the HBM traffic).
    x = jax.random.normal(k_x, (B, HID_DIM), dtype=jnp.float32).astype(jnp.bfloat16)

    # Deterministic init for seq_relationship_new = nn.Linear(hid_dim, 2).
    weight = jax.random.normal(k_w, (2, HID_DIM), dtype=jnp.float32) * 0.02
    bias = jax.random.normal(k_b, (2,), dtype=jnp.float32) * 0.02

    # Reference in plain JAX using the same bf16 weight values the kernel sees.
    w_f32 = weight.astype(jnp.bfloat16).astype(jnp.float32)

    probs = jax.block_until_ready(retrieval_head(x, weight, bias, zero_shot=False))
    ref = jax.nn.softmax(x.astype(jnp.float32) @ w_f32.T + bias, axis=1)
    assert probs.shape == (B, 2)
    assert jnp.allclose(probs, ref, atol=2e-3, rtol=2e-3)
    assert jnp.allclose(jnp.sum(probs, axis=1), jnp.ones((B,)), atol=2e-3)

    # Gridded / partial-last-block path (B=20, block_b=8 -> tb=16, 2 grid steps,
    # last block partial with 4 valid rows).
    B2 = 20
    x2 = jax.random.normal(jax.random.PRNGKey(1), (B2, HID_DIM),
                           dtype=jnp.float32).astype(jnp.bfloat16)
    probs2 = jax.block_until_ready(
        retrieval_head(x2, weight, bias, zero_shot=False, block_b=8))
    ref2 = jax.nn.softmax(x2.astype(jnp.float32) @ w_f32.T + bias, axis=1)
    assert probs2.shape == (B2, 2)
    assert jnp.allclose(probs2, ref2, atol=2e-3, rtol=2e-3)

    # Mid-size batch that exercises the "split into 2 blocks for v7x" path
    # (B=48 bf16 -> tb=32, grid=(2,)).
    B3 = 48
    x3 = jax.random.normal(jax.random.PRNGKey(2), (B3, HID_DIM),
                           dtype=jnp.float32).astype(jnp.bfloat16)
    probs3 = jax.block_until_ready(retrieval_head(x3, weight, bias, zero_shot=False))
    ref3 = jax.nn.softmax(x3.astype(jnp.float32) @ w_f32.T + bias, axis=1)
    assert probs3.shape == (B3, 2)
    assert jnp.allclose(probs3, ref3, atol=2e-3, rtol=2e-3)

    # Zero-shot path: raw logits, no softmax.
    logits_zs = jax.block_until_ready(
        retrieval_head(x, weight, bias, zero_shot=True))
    ref_zs = x.astype(jnp.float32) @ w_f32.T + bias
    assert jnp.allclose(logits_zs, ref_zs, atol=1e-3, rtol=1e-3)

    print("KERNEL_OK")
</pallas_src>

<mosaic_0001>
module attributes {stable_mosaic.version = 11 : i64} {
  func.func @kernel(%arg0: i32, %arg1: memref<2x32xbf16, #tpu.memory_space<vmem>>, %arg2: memref<32x2xbf16, #tpu.memory_space<vmem>>, %arg3: memref<1x2xf32, #tpu.memory_space<vmem>>, %arg4: memref<2x2xf32, #tpu.memory_space<vmem>>) attributes {dimension_semantics = [#tpu.dimension_semantics<parallel>], iteration_bounds = array<i64: 1>, scalar_prefetch = 0 : i64, scratch_operands = 0 : i64, tpu.core_type = #tpu.core_type<tc>, window_params = [{transform_indices = @transform_0, window_bounds = array<i64: 2, 32>}, {pipeline_mode = #tpu.pipeline_mode<synchronous>, transform_indices = @transform_1, window_bounds = array<i64: 32, 2>}, {pipeline_mode = #tpu.pipeline_mode<synchronous>, transform_indices = @transform_2, window_bounds = array<i64: 1, 2>}, {transform_indices = @transform_3, window_bounds = array<i64: 2, 2>}]} {
    %c0 = arith.constant 0 : index
    %c0_0 = arith.constant 0 : index
    %0 = vector.load %arg1[%c0, %c0_0] : memref<2x32xbf16, #tpu.memory_space<vmem>>, vector<2x32xbf16>
    %c0_1 = arith.constant 0 : index
    %c0_2 = arith.constant 0 : index
    %1 = vector.load %arg2[%c0_1, %c0_2] : memref<32x2xbf16, #tpu.memory_space<vmem>>, vector<32x2xbf16>
    %cst = arith.constant dense<0.000000e+00> : vector<2x2xf32>
    %2 = tpu.matmul %0, %1, %cst {dimension_numbers = #tpu.dot_dimension_numbers<[1], [0], [0], [1], [0, 0, 1, 1], [], []>} : vector<2x32xbf16>, vector<32x2xbf16>, vector<2x2xf32> -> vector<2x2xf32>
    %c0_3 = arith.constant 0 : index
    %c0_4 = arith.constant 0 : index
    %3 = vector.load %arg3[%c0_3, %c0_4] : memref<1x2xf32, #tpu.memory_space<vmem>>, vector<1x2xf32>
    %4 = vector.broadcast %3 : vector<1x2xf32> to vector<2x2xf32>
    %5 = arith.addf %2, %4 : vector<2x2xf32>
    %cst_5 = arith.constant 0.000000e+00 : f32
    %6 = vector.broadcast %cst_5 : f32 to vector<2x2xf32>
    %7 = arith.subf %6, %5 : vector<2x2xf32>
    %8 = math.exp %7 : vector<2x2xf32>
    %cst_6 = arith.constant 1.000000e+00 : f32
    %9 = vector.broadcast %cst_6 : f32 to vector<2x2xf32>
    %10 = arith.addf %9, %8 : vector<2x2xf32>
    %11 = tpu.reciprocal %10 {approx = true} : vector<2x2xf32> -> vector<2x2xf32>
    %c0_7 = arith.constant 0 : index
    %c0_8 = arith.constant 0 : index
    %12 = vector.load %arg4[%c0_7, %c0_8] : memref<2x2xf32, #tpu.memory_space<vmem>>, vector<2x2xf32>
    tpu.vector_store %arg4[%c0_7, %c0_8], %11 {strides = array<i32>} : memref<2x2xf32, #tpu.memory_space<vmem>>, vector<2x2xf32>,
    return
  }
  func.func @transform_0(%arg0: i32) -> (i32, i32) {
    %c0_i32 = arith.constant 0 : i32
    %c0_i32_0 = arith.constant 0 : i32
    return %arg0, %c0_i32 : i32, i32
  }
  func.func @transform_1(%arg0: i32) -> (i32, i32) {
    %c0_i32 = arith.constant 0 : i32
    %c0_i32_0 = arith.constant 0 : i32
    %c0_i32_1 = arith.constant 0 : i32
    return %c0_i32, %c0_i32_0 : i32, i32
  }
  func.func @transform_2(%arg0: i32) -> (i32, i32) {
    %c0_i32 = arith.constant 0 : i32
    %c0_i32_0 = arith.constant 0 : i32
    %c0_i32_1 = arith.constant 0 : i32
    return %c0_i32, %c0_i32_0 : i32, i32
  }
  func.func @transform_3(%arg0: i32) -> (i32, i32) {
    %c0_i32 = arith.constant 0 : i32
    %c0_i32_0 = arith.constant 0 : i32
    return %arg0, %c0_i32 : i32, i32
  }
}

</mosaic_0001>

<llo_original>
// kernel: tpu_custom_call.1
$region0: #{tpu_custom_call.1}
  #allocation0 [shape = 'u32[]', space=smem, size = 0x4, offset = 0x4, fixed_abs, tag = 'smem constant byte address 0x4 - core index']
  #allocation1 [shape = 'u32[144,128]{1,0:T(1,128)}', space=vmem, size = 0x12000, scoped, tag = 'internal scratch']
  %s0 = inlined_call_operand.vmem [shape: bf16[2,32], index: 0, kind: input, shape index: {}]
  %s1 = inlined_call_operand.vmem [shape: bf16[32,2], index: 1, kind: input, shape index: {}]
  %s2 = inlined_call_operand.vmem [shape: f32[1,2], index: 2, kind: input, shape index: {}]
  %s3 = inlined_call_operand.hbm [shape: f32[2,2], index: 3, kind: output, shape index: {}]
  %s4 = sld [smem:[#allocation0]]
  $region22: #{tpu_custom_call.1} parent=0
    _
  %s6 = ssub.s32 1, %s4
  %s7 = scalar_select 0, %s6, %s4
  $region1: #{tpu_custom_call.1} parent=0
    #allocation2 [shape = 'u8[1024]{0}', space=vmem, size = 0x400, scoped, tag = 'output window, operand 0, single buffered']
    #allocation3 [shape = 's32[1]{0}', space=sflag, size = 0x4, scoped, tag = 'scoped memory for tpu_custom_call.1']
    %8 = vsyncpa [#allocation3], 0
    // Predicated region
    $region2: #{tpu_custom_call.1} parent=1 // pred_check
      _
    $region3: #{tpu_custom_call.1} parent=1 // pred_check_branch
      %10 = sbr.rel (0) target = $region5
    $region4: #{tpu_custom_call.1} parent=1 // pred_region
      _
    $region5: #{tpu_custom_call.1} parent=1 // pred_fallthru
      _
    // Predicated region
    $region6: #{tpu_custom_call.1} parent=1 // pred_check
      _
    $region7: #{tpu_custom_call.1} parent=1 // pred_check_branch
      %12 = sbr.rel (0) target = $region9
    $region8: #{tpu_custom_call.1} parent=1 // pred_region
      _
    $region9: #{tpu_custom_call.1} parent=1 // pred_fallthru
      _
    // Predicated region
    $region10: #{tpu_custom_call.1} parent=1 // pred_check
      _
    $region11: #{tpu_custom_call.1} parent=1 // pred_check_branch
      %14 = sbr.rel (0) target = $region13
    $region12: #{tpu_custom_call.1} parent=1 // pred_region
      _
    $region13: #{tpu_custom_call.1} parent=1 // pred_fallthru
      _
    %v16 = vld [vmem:[%s0] sm:$0x1]
    %v17 = vld [vmem:[%s1] sm:$0xf]
    %v18 = vld [vmem:[%s1 + $0x4] sm:$0xf]
    %v19 = vld [vmem:[%s1 + $0x8] sm:$0xf]
    %v20 = vld [vmem:[%s1 + $0xc] sm:$0xf]
    %v21 = vld [vmem:[%s2] sm:$0x1]
    %v23 = vlaneseq
    %v24 = vshrl.u32 %v23, 7
    %v25 = vsub.s32 0, %v24
    %v26 = vrot.slane %v21, %v25
    %v32 = vunpack.c.l.b16 %v17
    %v33 = vunpack.c.l.b16 %v18
    %v34 = vunpack.c.l.b16 %v19
    %v35 = vunpack.c.l.b16 %v20
    %v36 = vpack.c.b16 %v33, %v32
    %v37 = vpack.c.b16 %v35, %v34
    %vm40 = vcmask 261120
    %v42 = vsel %vm40, %v16, 0
    %44 = vmatprep.subr.bf16.mxu0 0
    %45 = vmatpush1.bf16.msra.mxu0 0
    %46 = vmatprep.subr.bf16.mxu0 0
    %47 = vmatpush1.bf16.msra.mxu0 0
    %48 = vmatprep.subr.bf16.mxu0 0
    %49 = vmatpush1.bf16.msra.mxu0 0
    %50 = vmatprep.subr.bf16.mxu0 0
    %51 = vmatpush1.bf16.msra.mxu0 0
    %52 = vmatprep.subr.bf16.mxu0 0
    %53 = vmatpush1.bf16.msra.mxu0 0
    %54 = vmatprep.subr.bf16.mxu0 0
    %55 = vmatpush1.bf16.msra.mxu0 0
    %56 = vmatprep.subr.bf16.mxu0 0
    %57 = vmatpush1.bf16.msra.mxu0 %v37
    %58 = vmatprep.subr.bf16.mxu0 0
    %59 = vmatpush1.bf16.msra.mxu0 %v36
    %60 = vmatprep.subr.bf16.mxu0 0
    %61 = vmatpush2.bf16.msra.mxu0 0
    %62 = vmatprep.subr.bf16.mxu0 0
    %63 = vmatpush2.bf16.msra.mxu0 0
    %64 = vmatprep.subr.bf16.mxu0 0
    %65 = vmatpush2.bf16.msra.mxu0 0
    %66 = vmatprep.subr.bf16.mxu0 0
    %67 = vmatpush2.bf16.msra.mxu0 0
    %68 = vmatprep.subr.bf16.mxu0 0
    %69 = vmatpush2.bf16.msra.mxu0 0
    %70 = vmatprep.subr.bf16.mxu0 0
    %71 = vmatpush2.bf16.msra.mxu0 0
    %72 = vmatprep.subr.bf16.mxu0 0
    %73 = vmatpush2.bf16.msra.mxu0 0
    %74 = vmatprep.subr.bf16.mxu0 0
    %75 = vmatpush2.bf16.msra.mxu0 0
    %76 = vmatprep.mubr.bf16.mxu0 0
    %77 = vmatmul.mubr.bf16.gmra.mxu0 %v42
    %v78 = vpop.f32.mrf.mxu0
    %v79 = vadd.f32 %v26, %v78
    %v80 = vpop.f32.mrf.mxu0
    %v81 = vpop.f32.mrf.mxu0
    %v82 = vpop.f32.mrf.mxu0
    %83 = vdwg.mxu0
    %v84 = vsub.f32 0.0, %v79
    %v85 = vmul.f32 %v84, 1.442695
    %v86 = vpow.pop %v85
    %v87 = vadd.f32 %v86, 1.0
    %v88 = vrcp.pop %v87
    %vm89 = vcmask 9216
    %90 = vst.msk [vmem:[#allocation2] sm:$0x3] %vm89, %v88
    // Predicated region
    $region14: #{tpu_custom_call.1} parent=1 // pred_check
      _
    $region15: #{tpu_custom_call.1} parent=1 // pred_check_branch
      %92 = sbr.rel (0) target = $region17
    $region16: #{tpu_custom_call.1} parent=1 // pred_region
      %s94 = ssub.s32 32, 32
      %95 = vsyncadd [#allocation3], %s94
      %s97 = sshll.u32 [#allocation2], 4
      %s98 = int_to_ptr.vmem [resolvable:$true] %s97
      %100 = dma.vmem_to_hbm [thread:$0]  %s98, 32, %s3, [#allocation3]
    $region17: #{tpu_custom_call.1} parent=1 // pred_fallthru
      _
    // Predicated region
    $region18: #{tpu_custom_call.1} parent=1 // pred_check
      _
    $region19: #{tpu_custom_call.1} parent=1 // pred_check_branch
      %102 = sbr.rel (0) target = $region21
    $region20: #{tpu_custom_call.1} parent=1 // pred_region
      %103 = dma.done [#allocation3], 32
    $region21: #{tpu_custom_call.1} parent=1 // pred_fallthru
      _
    %104 = vsyncpa [#allocation3], 1

</llo_original>
